<compile_context>
chip_gen: v6e
topology: v6e:2x2x1
jax: 0.10.0
libtpu: 0.0.40
codegen_flags: <defaults>
</compile_context>

<pallas_src>
import math

import jax
import jax.numpy as jnp
import numpy as np
from jax.experimental import pallas as pl
from jax.experimental.pallas import tpu as pltpu


def _pos_embed_kernel(x_ref, pe_ref, o_ref):
    # x_ref: (Bt, S*D)   pe_ref: (1, S*D)   o_ref: (Bt, S*D)
    # Whole-tile load, sublane-broadcast add, whole-tile lane-dense store.
    o_ref[...] = (x_ref[...] + pe_ref[...]).astype(o_ref.dtype)


def make_pos_emb(seq_len, d_model):
    """Build the sinusoidal table exactly as the torch module's buffer.
    NOTE: the module uses -log(1000.0) (not the conventional 10000.0); we match
    the module."""
    position = jnp.arange(seq_len, dtype=jnp.float32)[:, None]                  # (S, 1)
    d = jnp.exp(jnp.arange(0, d_model, 2, dtype=jnp.float32)
                * (-math.log(1000.0) / d_model))                                # (D/2,)
    angles = position * d                                                       # (S, D/2)
    pe = jnp.zeros((seq_len, d_model), jnp.float32)
    pe = pe.at[:, 0::2].set(jnp.sin(angles))
    pe = pe.at[:, 1::2].set(jnp.cos(angles))
    return pe


def _choose_batch_tile(B, SD, bytes_per_elem, vmem_budget=16 << 20):
    """Pick the batch tile bt (a divisor of B).

    Live-VMEM model: x block + out block double-buffered (4x) plus pe's two
    buffers (2x).  Blocks with bt < B must keep bt a multiple of 8 (f32 sublane
    tile); bt == B is always layout-legal.  No ">=2 steps" requirement: on
    1-TC v5e/v6e extra grid steps are pure per-step overhead.  Only split
    2-way (for v7x's two TensorCores) when each half-step block is >= ~1 MiB.
    """
    def fits(bt):
        return (4 * bt * SD + 2 * SD) * bytes_per_elem <= vmem_budget

    def legal(bt):
        return bt == B or (bt % 8 == 0)

    best = B if fits(B) else 1
    if not fits(B):
        for bt in range(1, B):
            if B % bt == 0 and legal(bt) and fits(bt):
                best = bt

    # Optional 2-way split so a v7x megacore can shard the batch loop, but only
    # when the per-step block is big enough to amortize per-step overhead.
    if best == B and B % 2 == 0:
        half = B // 2
        if legal(half) and half * SD * bytes_per_elem >= (1 << 20):
            best = half
    return best


def position_embedding(x, pos_emb):
    """x: (B, S, D); pos_emb: (seq_len, D) with seq_len >= S.
    Returns x + pos_emb[:S] (dropout p=0 -> identity)."""
    B, S, D = x.shape
    SD = S * D
    # Lane-dense flattening: last dim becomes S*D (>=128-wide here), pe is a
    # single (1, S*D) row broadcast over the batch sublanes.
    x2 = x.reshape(B, SD)
    pe = pos_emb[:S, :].astype(x.dtype).reshape(1, SD)

    bt = _choose_batch_tile(B, SD, jnp.dtype(x.dtype).itemsize)

    grid_spec = pltpu.PrefetchScalarGridSpec(
        num_scalar_prefetch=0,
        grid=(B // bt,),
        in_specs=[
            pl.BlockSpec((bt, SD), lambda b: (b, 0)),   # x: batch-tiled, lane-dense
            pl.BlockSpec((1, SD), lambda b: (0, 0)),    # pe: constant tiny block
        ],
        out_specs=pl.BlockSpec((bt, SD), lambda b: (b, 0)),
    )

    out2 = pl.pallas_call(
        _pos_embed_kernel,
        out_shape=jax.ShapeDtypeStruct((B, SD), x.dtype),
        grid_spec=grid_spec,
        compiler_params=pltpu.CompilerParams(
            dimension_semantics=("parallel",),
            # Budget above assumes ~16 MiB of live blocks; 32 MiB scoped limit is
            # within physical VMEM on v5e/v6e (128 MiB) and v7x (64 MiB).
            vmem_limit_bytes=32 << 20),
    )(x2, pe)

    return out2.reshape(B, S, D)


def reference_position_embedding(x, pos_emb):
    """Pure-JAX reference matching the PyTorch module (dropout p=0)."""
    S = x.shape[1]
    return x + pos_emb[None, :S, :].astype(x.dtype)


if __name__ == "__main__":
    # Module config: d_model=32, seq_len=16 (buffer longer than the input seq),
    # dropout=0.0.  Input: batch=2, seq=8, d_model=32.
    B, S_IN, D_MODEL, SEQ_LEN = 2, 8, 32, 16

    key = jax.random.PRNGKey(0)
    x = jax.random.normal(key, (B, S_IN, D_MODEL), jnp.float32)

    pos_emb = make_pos_emb(SEQ_LEN, D_MODEL)

    # TODO(synk): training-mode dropout (p > 0) would need pltpu.prng_seed +
    # pltpu.stateful_bernoulli; forward here matches eval / p=0 (identity).
    out = position_embedding(x, pos_emb)
    out = jax.block_until_ready(out)

    ref = reference_position_embedding(x, pos_emb)
    np.testing.assert_allclose(np.asarray(out), np.asarray(ref),
                               rtol=1e-6, atol=1e-6)

    print("KERNEL_OK")
</pallas_src>

<mosaic_0001>
module attributes {stable_mosaic.version = 11 : i64} {
  func.func @_pos_embed_kernel(%arg0: i32, %arg1: memref<2x256xf32, #tpu.memory_space<vmem>>, %arg2: memref<1x256xf32, #tpu.memory_space<vmem>>, %arg3: memref<2x256xf32, #tpu.memory_space<vmem>>) attributes {dimension_semantics = [#tpu.dimension_semantics<parallel>], iteration_bounds = array<i64: 1>, scalar_prefetch = 0 : i64, scratch_operands = 0 : i64, tpu.core_type = #tpu.core_type<tc>, window_params = [{transform_indices = @transform_0, window_bounds = array<i64: 2, 256>}, {pipeline_mode = #tpu.pipeline_mode<synchronous>, transform_indices = @transform_1, window_bounds = array<i64: 1, 256>}, {transform_indices = @transform_2, window_bounds = array<i64: 2, 256>}]} {
    %c0 = arith.constant 0 : index
    %c0_0 = arith.constant 0 : index
    %0 = vector.load %arg1[%c0, %c0_0] : memref<2x256xf32, #tpu.memory_space<vmem>>, vector<2x256xf32>
    %c0_1 = arith.constant 0 : index
    %c0_2 = arith.constant 0 : index
    %1 = vector.load %arg2[%c0_1, %c0_2] : memref<1x256xf32, #tpu.memory_space<vmem>>, vector<1x256xf32>
    %2 = vector.broadcast %1 : vector<1x256xf32> to vector<2x256xf32>
    %3 = arith.addf %0, %2 : vector<2x256xf32>
    %c0_3 = arith.constant 0 : index
    %c0_4 = arith.constant 0 : index
    %4 = vector.load %arg3[%c0_3, %c0_4] : memref<2x256xf32, #tpu.memory_space<vmem>>, vector<2x256xf32>
    tpu.vector_store %arg3[%c0_3, %c0_4], %3 {strides = array<i32>} : memref<2x256xf32, #tpu.memory_space<vmem>>, vector<2x256xf32>,
    return
  }
  func.func @transform_0(%arg0: i32) -> (i32, i32) {
    %c0_i32 = arith.constant 0 : i32
    %c0_i32_0 = arith.constant 0 : i32
    return %arg0, %c0_i32 : i32, i32
  }
  func.func @transform_1(%arg0: i32) -> (i32, i32) {
    %c0_i32 = arith.constant 0 : i32
    %c0_i32_0 = arith.constant 0 : i32
    %c0_i32_1 = arith.constant 0 : i32
    return %c0_i32, %c0_i32_0 : i32, i32
  }
  func.func @transform_2(%arg0: i32) -> (i32, i32) {
    %c0_i32 = arith.constant 0 : i32
    %c0_i32_0 = arith.constant 0 : i32
    return %arg0, %c0_i32 : i32, i32
  }
}

</mosaic_0001>

<llo_original>
// kernel: tpu_custom_call.1
$region0: #{tpu_custom_call.1}
  #allocation0 [shape = 'u32[]', space=smem, size = 0x4, offset = 0x4, fixed_abs, tag = 'smem constant byte address 0x4 - core index']
  #allocation1 [shape = 'u32[144,128]{1,0:T(1,128)}', space=vmem, size = 0x12000, scoped, tag = 'internal scratch']
  %s0 = inlined_call_operand.hbm [shape: f32[2,256], index: 0, kind: input, shape index: {}]
  %s1 = inlined_call_operand.hbm [shape: f32[1,256], index: 1, kind: input, shape index: {}]
  %s2 = inlined_call_operand.hbm [shape: f32[2,256], index: 2, kind: output, shape index: {}]
  %s3 = sld [smem:[#allocation0]]
  $region26: #{tpu_custom_call.1} parent=0
    _
  %s5 = ssub.s32 1, %s3
  %s6 = scalar_select 0, %s5, %s3
  $region1: #{tpu_custom_call.1} parent=0
    #allocation2 [shape = 'u8[2048]{0}', space=vmem, size = 0x800, scoped, tag = 'input window, operand 0, single buffered']
    #allocation3 [shape = 's32[1]{0}', space=sflag, size = 0x4, scoped, tag = 'scoped memory for tpu_custom_call.1']
    #allocation4 [shape = 's32[1]{0}', space=sflag, size = 0x4, scoped, tag = 'scoped memory for tpu_custom_call.1']
    #allocation5 [shape = 'u8[1024]{0}', space=vmem, size = 0x400, scoped, tag = 'input window, operand 1, single buffered']
    #allocation6 [shape = 's32[1]{0}', space=sflag, size = 0x4, scoped, tag = 'scoped memory for tpu_custom_call.1']
    #allocation7 [shape = 'u8[2048]{0}', space=vmem, size = 0x800, scoped, tag = 'output window, operand 0, single buffered']
    %7 = vsyncpa [#allocation3], 0
    %8 = vsyncpa [#allocation6], 0
    %9 = vsyncpa [#allocation4], 0
    // Predicated region
    $region2: #{tpu_custom_call.1} parent=1 // pred_check
      _
    $region3: #{tpu_custom_call.1} parent=1 // pred_check_branch
      %11 = sbr.rel (0) target = $region5
    $region4: #{tpu_custom_call.1} parent=1 // pred_region
      %s13 = ssub.s32 64, 64
      %14 = vsyncadd [#allocation3], %s13
      %s16 = sshll.u32 [#allocation2], 4
      %s17 = int_to_ptr.vmem [resolvable:$true] %s16
      %19 = dma.hbm_to_vmem [thread:$0]  %s0, 64, %s17, [#allocation3]
    $region5: #{tpu_custom_call.1} parent=1 // pred_fallthru
      _
    // Predicated region
    $region6: #{tpu_custom_call.1} parent=1 // pred_check
      _
    $region7: #{tpu_custom_call.1} parent=1 // pred_check_branch
      %21 = sbr.rel (0) target = $region9
    $region8: #{tpu_custom_call.1} parent=1 // pred_region
      %s23 = ssub.s32 32, 32
      %24 = vsyncadd [#allocation6], %s23
      %s26 = sshll.u32 [#allocation5], 4
      %s27 = int_to_ptr.vmem [resolvable:$true] %s26
      %29 = dma.hbm_to_vmem [thread:$0]  %s1, 32, %s27, [#allocation6]
    $region9: #{tpu_custom_call.1} parent=1 // pred_fallthru
      _
    // Predicated region
    $region10: #{tpu_custom_call.1} parent=1 // pred_check
      _
    $region11: #{tpu_custom_call.1} parent=1 // pred_check_branch
      %31 = sbr.rel (0) target = $region13
    $region12: #{tpu_custom_call.1} parent=1 // pred_region
      %32 = dma.done [#allocation3], 64
    $region13: #{tpu_custom_call.1} parent=1 // pred_fallthru
      _
    // Predicated region
    $region14: #{tpu_custom_call.1} parent=1 // pred_check
      _
    $region15: #{tpu_custom_call.1} parent=1 // pred_check_branch
      %34 = sbr.rel (0) target = $region17
    $region16: #{tpu_custom_call.1} parent=1 // pred_region
      %35 = dma.done [#allocation6], 32
    $region17: #{tpu_custom_call.1} parent=1 // pred_fallthru
      _
    %v36 = vld [vmem:[#allocation2] sm:$0xf]
    %v37 = vld [vmem:[#allocation5] sm:$0x3]
    %v39 = vlaneseq
    %v40 = vshrl.u32 %v39, 7
    %v41 = vsub.s32 0, %v40
    %v42 = vrot.slane %v37, %v41
    %v43 = vlaneseq
    %v44 = vshrl.u32 %v43, 7
    %v45 = vsub.s32 1, %v44
    %v46 = vrot.slane %v37, %v45
    %v47 = vcombine.low %v42, %v46
    %v49 = vunpack.c.l.s4 1983009808
    %v50 = vunpack.c.0.s8 %v49
    %v51 = vlaneseq
    %v52 = vshrl.u32 %v51, 7
    %v53 = vsub.s32 %v50, %v52
    %v54 = vrot.slane %v47, %v53
    %v56 = vadd.f32 %v36, %v54
    %57 = vst [vmem:[#allocation7] sm:$0xf] %v56
    // Predicated region
    $region18: #{tpu_custom_call.1} parent=1 // pred_check
      _
    $region19: #{tpu_custom_call.1} parent=1 // pred_check_branch
      %59 = sbr.rel (0) target = $region21
    $region20: #{tpu_custom_call.1} parent=1 // pred_region
      %s61 = ssub.s32 64, 64
      %62 = vsyncadd [#allocation4], %s61
      %s64 = sshll.u32 [#allocation7], 4
      %s65 = int_to_ptr.vmem [resolvable:$true] %s64
      %67 = dma.vmem_to_hbm [thread:$0]  %s65, 64, %s2, [#allocation4]
    $region21: #{tpu_custom_call.1} parent=1 // pred_fallthru
      _
    // Predicated region
    $region22: #{tpu_custom_call.1} parent=1 // pred_check
      _
    $region23: #{tpu_custom_call.1} parent=1 // pred_check_branch
      %69 = sbr.rel (0) target = $region25
    $region24: #{tpu_custom_call.1} parent=1 // pred_region
      %70 = dma.done [#allocation4], 64
    $region25: #{tpu_custom_call.1} parent=1 // pred_fallthru
      _
    %71 = vsyncpa [#allocation3], 1
    %72 = vsyncpa [#allocation6], 1
    %73 = vsyncpa [#allocation4], 1

</llo_original>
